<compile_context>
chip_gen: v6e
topology: v6e:2x2x1
jax: 0.10.0
libtpu: 0.0.40
codegen_flags: <defaults>
</compile_context>

<pallas_src>
import functools
import math

import jax
import jax.numpy as jnp
from jax import lax
from jax.experimental import pallas as pl
from jax.experimental.pallas import tpu as pltpu


def _distill_loss_kernel(x_ref, y_ref, out_ref, acc_ref, *,
                         w2, tw, steps_per_part, guarded):
    """Accumulate sum_{b,w,d} (y - x)^2 for this partial's word tiles."""
    i = pl.program_id(1)

    @pl.when(i == 0)
    def _init():
        acc_ref[...] = jnp.zeros_like(acc_ref)

    x = x_ref[...].astype(jnp.float32)                 # (B, D2)
    y = y_ref[...].astype(jnp.float32)                 # (B, tw, D2)
    diff = y - x[:, None, :]                           # broadcast == repeat over words

    if guarded:
        # Rows belonging to the ragged tail or to phantom tiles (clamped
        # index_map re-fetches) must contribute exactly 0.
        tile_idx = pl.program_id(0) * steps_per_part + i
        limit = jnp.clip(w2 - tile_idx * tw, 0, tw)    # valid rows in this tile
        rows = lax.broadcasted_iota(jnp.int32, diff.shape, 1)
        diff = jnp.where(rows < limit, diff, 0.0)

    sq = diff * diff
    b, twk, d2 = sq.shape
    if twk % 8 == 0:
        # Per-step reduce across sublane groups (pure VPU vreg adds) into a
        # small (B, 8, D2) accumulator: no full-tile acc RMW in steady state.
        acc_ref[...] += jnp.sum(sq.reshape(b, twk // 8, 8, d2), axis=1)
    else:
        acc_ref[...] += jnp.sum(sq, axis=1, keepdims=True)

    @pl.when(i == pl.num_programs(1) - 1)
    def _finalize():
        # Reduce over batch only (VPU adds); wrapper sums the partial slab.
        out_ref[...] = jnp.sum(acc_ref[...], axis=0, keepdims=True)


def _fold(W, D):
    """Fold k consecutive words into one lane-dense row of width D2 = k*D."""
    if D % 128 == 0:
        return 1, D
    lane_row = (D * 128) // math.gcd(D, 128)           # lcm(D, 128)
    k = lane_row // D
    if W % k == 0 and lane_row <= 2048:
        return k, lane_row
    if 128 % D == 0:                                   # partial fold fallback
        k = 128 // D
        while k > 1 and W % k != 0:
            k -= 1
        return k, k * D
    return 1, D


def _choose_tile(B, W2, D2, itemsize, target_bytes):
    """Pick a sublane-aligned word-tile size tw.  Returns (tw, ragged)."""
    sub = max(8, 32 // itemsize)                       # 8 f32 / 16 bf16 / 32 int8
    row_bytes = B * D2 * itemsize
    if W2 <= sub or W2 * row_bytes <= target_bytes:
        return W2, False
    budget_tw = max(sub, (target_bytes // row_bytes) // sub * sub)
    budget_tw = min(budget_tw, (W2 // sub) * sub)
    # Prefer an exact divisor near the budget (no masking needed).
    t = budget_tw
    while t >= sub:
        if W2 % t == 0:
            break
        t -= sub
    if t >= sub and 2 * t >= budget_tw:
        return t, False
    return budget_tw, True                             # ragged: mask the tail


def _vmem_capacity_bytes():
    try:
        cap = getattr(pltpu.get_tpu_info(), "vmem_capacity_bytes", None)
        if cap:
            return int(cap)
    except Exception:
        pass
    return 64 * 1024 * 1024                            # conservative: v7x per-TC


def distill_loss(x, y, *, target_tile_bytes=None, min_pallas_bytes=256 * 1024):
    """Pallas implementation of DistillLoss.forward.

    x: (B, D) float array
    y: (B, NUM_WORDS, D) float array
    returns: scalar float32 total loss
    """
    B, D = x.shape
    By, W, Dy = y.shape
    assert B == By and D == Dy, "x and y must agree on batch and feature dims"

    y_bytes = y.size * jnp.dtype(y.dtype).itemsize
    if y_bytes < min_pallas_bytes:
        # Tiny-input fast path: kernel launch + pipeline prologue would dominate.
        return jnp.sum((y.astype(jnp.float32) - x.astype(jnp.float32)[:, None, :]) ** 2)

    # ---- Lane-dense folding: fold k words into the lane axis. ----
    k, D2 = _fold(W, D)
    W2 = W // k
    y2 = y.reshape(B, W2, D2)                          # metadata-only reshape
    xk = jnp.tile(x, (1, k)) if k > 1 else x           # (B, D2); x is tiny

    # ---- Generation-aware VMEM / tile budgets. ----
    vmem_cap = _vmem_capacity_bytes()
    vmem_soft_cap = (3 * vmem_cap) // 4                # headroom for compiler scratch
    if target_tile_bytes is None:
        target_tile_bytes = min(8 * 1024 * 1024, vmem_soft_cap // 6)

    itemsize = jnp.dtype(y2.dtype).itemsize
    row_bytes = B * D2 * itemsize
    total_bytes = W2 * row_bytes
    target = int(min(max(total_bytes // 8, 512 * 1024), target_tile_bytes))
    tw, ragged = _choose_tile(B, W2, D2, itemsize, target)
    steps_total = -(-W2 // tw)

    # ---- Always split into P=2 partials when there are >= 2 tiles (both
    #      TensorCores on v7x); odd counts get one clamped phantom tile. ----
    if steps_total >= 2:
        P = 2
        S = -(-steps_total // 2)
    else:
        P, S = 1, 1
    guarded = ragged or (P * S != steps_total)
    acc_rows = 8 if tw % 8 == 0 else 1

    if P * S > steps_total:
        y_index_map = lambda p, i: (0, jnp.minimum(p * S + i, steps_total - 1), 0)
    else:
        y_index_map = lambda p, i: (0, p * S + i, 0)

    # ---- VMEM budget: y double-buffer + x + small f32 acc + output block. ----
    x_itemsize = jnp.dtype(xk.dtype).itemsize
    need = (2 * B * tw * D2 * itemsize                 # y tile, double-buffered
            + 2 * B * D2 * x_itemsize                  # resident x block
            + B * acc_rows * D2 * 4                    # f32 accumulator scratch
            + 2 * acc_rows * D2 * 4)                   # per-partial output block
    vmem_limit = int(min(max(int(1.5 * need), 4 * 1024 * 1024), vmem_soft_cap))

    kernel = functools.partial(_distill_loss_kernel, w2=W2, tw=tw,
                               steps_per_part=S, guarded=guarded)

    partials = pl.pallas_call(
        kernel,
        out_shape=jax.ShapeDtypeStruct((P, acc_rows, D2), jnp.float32),
        grid_spec=pltpu.PrefetchScalarGridSpec(
            num_scalar_prefetch=0,
            grid=(P, S),
            in_specs=[
                # x: one small block, resident (same index every step -> one DMA).
                pl.BlockSpec((B, D2), lambda p, i: (0, 0)),
                # y: streamed word tiles; partial p owns tiles [p*S, (p+1)*S).
                pl.BlockSpec((B, tw, D2), y_index_map),
            ],
            # One lane-dense slab per partial; distinct block per p (no race).
            out_specs=pl.BlockSpec((1, acc_rows, D2), lambda p, i: (p, 0, 0)),
            scratch_shapes=[pltpu.VMEM((B, acc_rows, D2), jnp.float32)],
        ),
        compiler_params=pltpu.CompilerParams(
            dimension_semantics=("parallel", "arbitrary"),
            vmem_limit_bytes=vmem_limit,
        ),
    )(xk, y2)

    # Every element of `partials` is a genuine partial sum; total = grand sum.
    return jnp.sum(partials)


if __name__ == "__main__":
    def ref_loss(xr, yr):
        return jnp.sum((yr.astype(jnp.float32) - xr.astype(jnp.float32)[:, None, :]) ** 2)

    # 1) Small shapes consistent with the forward: B=2, NUM_WORDS=8, D=32.
    #    min_pallas_bytes=0 forces the Pallas path even for this tiny input.
    B, NUM_WORDS, D = 2, 8, 32
    kx, ky = jax.random.split(jax.random.PRNGKey(0))
    x = jax.random.normal(kx, (B, D), dtype=jnp.float32)
    y = jax.random.normal(ky, (B, NUM_WORDS, D), dtype=jnp.float32)
    loss = jax.block_until_ready(distill_loss(x, y, min_pallas_bytes=0))
    r = ref_loss(x, y)
    assert jnp.allclose(loss, r, rtol=1e-4, atol=1e-2), (loss, r)

    # 2) Multi-step, two-partial pipelined path (small tile forced): grid=(2, 8).
    kx2, ky2 = jax.random.split(jax.random.PRNGKey(1))
    xb = jax.random.normal(kx2, (B, D), dtype=jnp.float32)
    yb = jax.random.normal(ky2, (B, 4096, D), dtype=jnp.float32)
    lb = jax.block_until_ready(
        distill_loss(xb, yb, target_tile_bytes=64 * 1024, min_pallas_bytes=0))
    rb = ref_loss(xb, yb)
    assert jnp.allclose(lb, rb, rtol=1e-4, atol=1e-1), (lb, rb)

    # 3) Ragged word count: W=1000 -> W2=250, tw=32, masked tail tile.
    kx3, ky3 = jax.random.split(jax.random.PRNGKey(2))
    xc = jax.random.normal(kx3, (B, D), dtype=jnp.float32)
    yc = jax.random.normal(ky3, (B, 1000, D), dtype=jnp.float32)
    lc = jax.block_until_ready(
        distill_loss(xc, yc, target_tile_bytes=32 * 1024, min_pallas_bytes=0))
    rc = ref_loss(xc, yc)
    assert jnp.allclose(lc, rc, rtol=1e-4, atol=1e-1), (lc, rc)

    # 4) Feature dim that does not divide 128 (generalized fold: D=48 -> D2=384).
    kx4, ky4 = jax.random.split(jax.random.PRNGKey(3))
    xd = jax.random.normal(kx4, (B, 48), dtype=jnp.float32)
    yd = jax.random.normal(ky4, (B, 64, 48), dtype=jnp.float32)
    ld = jax.block_until_ready(distill_loss(xd, yd, min_pallas_bytes=0))
    rd = ref_loss(xd, yd)
    assert jnp.allclose(ld, rd, rtol=1e-4, atol=1e-2), (ld, rd)

    print("KERNEL_OK")
</pallas_src>

<mosaic_0001>
module attributes {stable_mosaic.version = 11 : i64} {
  func.func @_distill_loss_kernel(%arg0: i32, %arg1: i32, %arg2: memref<2x128xf32, #tpu.memory_space<vmem>>, %arg3: memref<2x2x128xf32, #tpu.memory_space<vmem>>, %arg4: memref<1x1x128xf32, #tpu.memory_space<vmem>>, %arg5: memref<2x1x128xf32, #tpu.memory_space<vmem>>) attributes {dimension_semantics = [#tpu.dimension_semantics<parallel>, #tpu.dimension_semantics<arbitrary>], iteration_bounds = array<i64: 1, 1>, scalar_prefetch = 0 : i64, scratch_operands = 1 : i64, tpu.core_type = #tpu.core_type<tc>, window_params = [{pipeline_mode = #tpu.pipeline_mode<synchronous>, transform_indices = @transform_0, window_bounds = array<i64: 2, 128>}, {transform_indices = @transform_1, window_bounds = array<i64: 2, 2, 128>}, {transform_indices = @transform_2, window_bounds = array<i64: 1, 1, 128>}]} {
    %c0_i32 = arith.constant 0 : i32
    %0 = arith.cmpi eq, %arg1, %c0_i32 : i32
    %1 = arith.extui %0 : i1 to i32
    %c0_i32_0 = arith.constant 0 : i32
    %2 = arith.cmpi ne, %1, %c0_i32_0 : i32
    scf.if %2 {
      %cst_13 = arith.constant 0.000000e+00 : f32
      %17 = vector.broadcast %cst_13 : f32 to vector<2x1x128xf32>
      %c0_14 = arith.constant 0 : index
      %c0_15 = arith.constant 0 : index
      %c0_16 = arith.constant 0 : index
      %18 = vector.load %arg5[%c0_14, %c0_15, %c0_16] : memref<2x1x128xf32, #tpu.memory_space<vmem>>, vector<2x1x128xf32>
      tpu.vector_store %arg5[%c0_14, %c0_15, %c0_16], %17 {strides = array<i32>} : memref<2x1x128xf32, #tpu.memory_space<vmem>>, vector<2x1x128xf32>,
    } else {
    }
    %c0 = arith.constant 0 : index
    %c0_1 = arith.constant 0 : index
    %3 = vector.load %arg2[%c0, %c0_1] : memref<2x128xf32, #tpu.memory_space<vmem>>, vector<2x128xf32>
    %c0_2 = arith.constant 0 : index
    %c0_3 = arith.constant 0 : index
    %c0_4 = arith.constant 0 : index
    %4 = vector.load %arg3[%c0_2, %c0_3, %c0_4] : memref<2x2x128xf32, #tpu.memory_space<vmem>>, vector<2x2x128xf32>
    %5 = vector.shape_cast %3 : vector<2x128xf32> to vector<2x1x128xf32>
    %6 = vector.broadcast %5 : vector<2x1x128xf32> to vector<2x2x128xf32>
    %7 = arith.subf %4, %6 : vector<2x2x128xf32>
    %8 = arith.mulf %7, %7 : vector<2x2x128xf32>
    %c0_5 = arith.constant 0 : index
    %c0_6 = arith.constant 0 : index
    %c0_7 = arith.constant 0 : index
    %9 = vector.load %arg5[%c0_5, %c0_6, %c0_7] : memref<2x1x128xf32, #tpu.memory_space<vmem>>, vector<2x1x128xf32>
    %cst = arith.constant dense<0.000000e+00> : vector<2x128xf32>
    %10 = vector.multi_reduction <add>, %8, %cst [1] : vector<2x2x128xf32> to vector<2x128xf32>
    %11 = vector.shape_cast %10 : vector<2x128xf32> to vector<2x1x128xf32>
    %12 = arith.addf %9, %11 : vector<2x1x128xf32>
    %c0_8 = arith.constant 0 : index
    %c0_9 = arith.constant 0 : index
    %c0_10 = arith.constant 0 : index
    %13 = vector.load %arg5[%c0_8, %c0_9, %c0_10] : memref<2x1x128xf32, #tpu.memory_space<vmem>>, vector<2x1x128xf32>
    tpu.vector_store %arg5[%c0_8, %c0_9, %c0_10], %12 {strides = array<i32>} : memref<2x1x128xf32, #tpu.memory_space<vmem>>, vector<2x1x128xf32>,
    %c0_i32_11 = arith.constant 0 : i32
    %14 = arith.cmpi eq, %arg1, %c0_i32_11 : i32
    %15 = arith.extui %14 : i1 to i32
    %c0_i32_12 = arith.constant 0 : i32
    %16 = arith.cmpi ne, %15, %c0_i32_12 : i32
    scf.if %16 {
      %c0_13 = arith.constant 0 : index
      %c0_14 = arith.constant 0 : index
      %c0_15 = arith.constant 0 : index
      %17 = vector.load %arg5[%c0_13, %c0_14, %c0_15] : memref<2x1x128xf32, #tpu.memory_space<vmem>>, vector<2x1x128xf32>
      %cst_16 = arith.constant dense<0.000000e+00> : vector<1x128xf32>
      %18 = vector.multi_reduction <add>, %17, %cst_16 [0] : vector<2x1x128xf32> to vector<1x128xf32>
      %19 = vector.shape_cast %18 : vector<1x128xf32> to vector<1x1x128xf32>
      %c0_17 = arith.constant 0 : index
      %c0_18 = arith.constant 0 : index
      %c0_19 = arith.constant 0 : index
      %20 = vector.load %arg4[%c0_17, %c0_18, %c0_19] : memref<1x1x128xf32, #tpu.memory_space<vmem>>, vector<1x1x128xf32>
      tpu.vector_store %arg4[%c0_17, %c0_18, %c0_19], %19 {strides = array<i32>} : memref<1x1x128xf32, #tpu.memory_space<vmem>>, vector<1x1x128xf32>,
    } else {
    }
    return
  }
  func.func @transform_0(%arg0: i32, %arg1: i32) -> (i32, i32) {
    %c0_i32 = arith.constant 0 : i32
    %c0_i32_0 = arith.constant 0 : i32
    %c0_i32_1 = arith.constant 0 : i32
    return %c0_i32, %c0_i32_0 : i32, i32
  }
  func.func @transform_1(%arg0: i32, %arg1: i32) -> (i32, i32, i32) {
    %c1_i32 = arith.constant 1 : i32
    %0 = arith.muli %arg0, %c1_i32 : i32
    %1 = arith.addi %0, %arg1 : i32
    %c0_i32 = arith.constant 0 : i32
    %c0_i32_0 = arith.constant 0 : i32
    %c0_i32_1 = arith.constant 0 : i32
    return %c0_i32, %1, %c0_i32_0 : i32, i32, i32
  }
  func.func @transform_2(%arg0: i32, %arg1: i32) -> (i32, i32, i32) {
    %c0_i32 = arith.constant 0 : i32
    %c0_i32_0 = arith.constant 0 : i32
    %c0_i32_1 = arith.constant 0 : i32
    return %arg0, %c0_i32, %c0_i32_0 : i32, i32, i32
  }
}

</mosaic_0001>

<llo_original>
// kernel: tpu_custom_call.1
$region0: #{tpu_custom_call.1}
  #allocation0 [shape = 'u32[]', space=smem, size = 0x4, offset = 0x4, fixed_abs, tag = 'smem constant byte address 0x4 - core index']
  #allocation1 [shape = 'u32[144,128]{1,0:T(1,128)}', space=vmem, size = 0x12000, scoped, tag = 'internal scratch']
  #allocation2 [shape = 'f32[2,1,128]{2,1,0:T(1,128)}', space=vmem, size = 0x400, scoped, tag = 'scratch operand']
  %s0 = inlined_call_operand.hbm [shape: f32[2,128], index: 0, kind: input, shape index: {}]
  %s1 = inlined_call_operand.hbm [shape: f32[2,2,128], index: 1, kind: input, shape index: {}]
  %s2 = inlined_call_operand.hbm [shape: f32[1,1,128], index: 2, kind: output, shape index: {}]
  %s3 = sld [smem:[#allocation0]]
  $region34: #{tpu_custom_call.1} parent=0
    _
  %s5 = ssub.s32 1, %s3
  %s6 = scalar_select 0, %s5, %s3
  $region1: #{tpu_custom_call.1} parent=0
    #allocation3 [shape = 'u8[1024]{0}', space=vmem, size = 0x400, scoped, tag = 'input window, operand 0, single buffered']
    #allocation4 [shape = 's32[1]{0}', space=sflag, size = 0x4, scoped, tag = 'scoped memory for tpu_custom_call.1']
    #allocation5 [shape = 's32[1]{0}', space=sflag, size = 0x4, scoped, tag = 'scoped memory for tpu_custom_call.1']
    #allocation6 [shape = 'u8[2048]{0}', space=vmem, size = 0x800, scoped, tag = 'input window, operand 1, single buffered']
    #allocation7 [shape = 's32[1]{0}', space=sflag, size = 0x4, scoped, tag = 'scoped memory for tpu_custom_call.1']
    #allocation8 [shape = 'u8[512]{0}', space=vmem, size = 0x400, scoped, tag = 'output window, operand 0, single buffered']
    %7 = vsyncpa [#allocation4], 0
    %8 = vsyncpa [#allocation7], 0
    %9 = vsyncpa [#allocation5], 0
    // Predicated region
    $region2: #{tpu_custom_call.1} parent=1 // pred_check
      _
    $region3: #{tpu_custom_call.1} parent=1 // pred_check_branch
      %11 = sbr.rel (0) target = $region5
    $region4: #{tpu_custom_call.1} parent=1 // pred_region
      %s13 = ssub.s32 32, 32
      %14 = vsyncadd [#allocation4], %s13
      %s16 = sshll.u32 [#allocation3], 4
      %s17 = int_to_ptr.vmem [resolvable:$true] %s16
      %19 = dma.hbm_to_vmem [thread:$0]  %s0, 32, %s17, [#allocation4]
    $region5: #{tpu_custom_call.1} parent=1 // pred_fallthru
      _
    // Predicated region
    $region6: #{tpu_custom_call.1} parent=1 // pred_check
      _
    $region7: #{tpu_custom_call.1} parent=1 // pred_check_branch
      %21 = sbr.rel (0) target = $region9
    $region8: #{tpu_custom_call.1} parent=1 // pred_region
      %s22 = sadd.s32 0, 0
      %s24 = ssub.s32 64, 64
      %25 = vsyncadd [#allocation7], %s24
      %s26 = smul.addr %s22, 32
      %s27 = scalar_lea.hbm %s1, %s26
      %s28 = sshll.u32 [#allocation6], 4
      %s29 = int_to_ptr.vmem [resolvable:$true] %s28
      %34 = dma.hbm_to_vmem [thread:$0]  %s27, 64, %s29, [#allocation7], 32, 32, 2
    $region9: #{tpu_custom_call.1} parent=1 // pred_fallthru
      _
    // Predicated region
    $region10: #{tpu_custom_call.1} parent=1 // pred_check
      _
    $region11: #{tpu_custom_call.1} parent=1 // pred_check_branch
      %36 = sbr.rel (0) target = $region13
    $region12: #{tpu_custom_call.1} parent=1 // pred_region
      %37 = dma.done [#allocation4], 32
    $region13: #{tpu_custom_call.1} parent=1 // pred_fallthru
      _
    // Predicated region
    $region14: #{tpu_custom_call.1} parent=1 // pred_check
      _
    $region15: #{tpu_custom_call.1} parent=1 // pred_check_branch
      %39 = sbr.rel (0) target = $region17
    $region16: #{tpu_custom_call.1} parent=1 // pred_region
      %40 = dma.done [#allocation7], 64
    $region17: #{tpu_custom_call.1} parent=1 // pred_fallthru
      _
    %s41 = sadd.s32 0, 0
    %p42 = scmp.eq.s32.totalorder 0, 0
    // Predicated region
    $region18: #{tpu_custom_call.1} parent=1 // pred_check
      %p43 = pneg %p42
    $region19: #{tpu_custom_call.1} parent=1 // pred_check_branch
      %45 = sbr.rel (%p43) target = $region21
    $region20: #{tpu_custom_call.1} parent=1 // pred_region
      %46 = vst [vmem:[#allocation2] sm:$0x1] 0.0
      %47 = vst [vmem:[#allocation2 + $0x1] sm:$0x1] 0.0
    $region21: #{tpu_custom_call.1} parent=1 // pred_fallthru
      _
    %v48 = vld [vmem:[#allocation3] sm:$0x3]
    %v49 = vld [vmem:[#allocation6] sm:$0x3]
    %v50 = vld [vmem:[#allocation6 + $0x2] sm:$0x3]
    %v53 = vunpack.c.l.s4 1966171168
    %v54 = vunpack.c.0.s8 %v53
    %v55 = vlaneseq
    %v56 = vshrl.u32 %v55, 7
    %v57 = vsub.s32 %v54, %v56
    %v58 = vrot.slane %v48, %v57
    %v59 = vcombine.high %v58, %v58
    %v61 = vunpack.c.l.s4 1966171168
    %v62 = vunpack.c.0.s8 %v61
    %v63 = vlaneseq
    %v64 = vshrl.u32 %v63, 7
    %v65 = vsub.s32 %v62, %v64
    %v66 = vrot.slane %v58, %v65
    %v68 = vunpack.c.l.s4 1966171168
    %v69 = vunpack.c.0.s8 %v68
    %v70 = vlaneseq
    %v71 = vshrl.u32 %v70, 7
    %v72 = vsub.s32 %v69, %v71
    %v73 = vrot.slane %v59, %v72
    %v74 = vlaneseq
    %v75 = vshrl.u32 %v74, 7
    %v76 = vsub.s32 0, %v75
    %v77 = vrot.slane %v66, %v76
    %v78 = vlaneseq
    %v79 = vshrl.u32 %v78, 7
    %v80 = vsub.s32 0, %v79
    %v81 = vrot.slane %v73, %v80
    %v84 = vsub.f32 %v49, %v77
    %v85 = vsub.f32 %v50, %v81
    %v86 = vmul.f32 %v84, %v84
    %v87 = vmul.f32 %v85, %v85
    %v88 = vld [vmem:[#allocation2] sm:$0x1]
    %v89 = vld [vmem:[#allocation2 + $0x1] sm:$0x1]
    %vm90 = vcmask 1041408
    %v91 = vsel %vm90, %v86, 0.0
    %v92 = vrot.slane %v91, 4
    %v93 = vadd.f32 %v91, %v92
    %v94 = vrot.slane %v93, 2
    %v95 = vadd.f32 %v93, %v94
    %v96 = vrot.slane %v95, 1
    %v97 = vadd.f32 %v95, %v96
    %v98 = vsel %vm90, %v87, 0.0
    %v99 = vrot.slane %v98, 4
    %v100 = vadd.f32 %v98, %v99
    %v101 = vrot.slane %v100, 2
    %v102 = vadd.f32 %v100, %v101
    %v103 = vrot.slane %v102, 1
    %v104 = vadd.f32 %v102, %v103
    %v105 = vadd.f32 %v88, %v97
    %v106 = vadd.f32 %v89, %v104
    %107 = vst [vmem:[#allocation2] sm:$0x1] %v105
    %108 = vst [vmem:[#allocation2 + $0x1] sm:$0x1] %v106
    // Predicated region
    $region22: #{tpu_custom_call.1} parent=1 // pred_check
      %p109 = pneg %p42
    $region23: #{tpu_custom_call.1} parent=1 // pred_check_branch
      %111 = sbr.rel (%p109) target = $region25
    $region24: #{tpu_custom_call.1} parent=1 // pred_region
      %v112 = vld [vmem:[#allocation2] sm:$0x1]
      %v113 = vld [vmem:[#allocation2 + $0x1] sm:$0x1]
      %vm114 = vcmask 1040384
      %v115 = vsel %vm114, %v112, 0.0
      %v116 = vsel %vm114, %v113, 0.0
      %v117 = vadd.f32 %v115, %v116
      %118 = vst [vmem:[#allocation8] sm:$0x1] %v117
    $region25: #{tpu_custom_call.1} parent=1 // pred_fallthru
      _
    // Predicated region
    $region26: #{tpu_custom_call.1} parent=1 // pred_check
      _
    $region27: #{tpu_custom_call.1} parent=1 // pred_check_branch
      %120 = sbr.rel (0) target = $region29
    $region28: #{tpu_custom_call.1} parent=1 // pred_region
      %s122 = ssub.s32 16, 16
      %123 = vsyncadd [#allocation5], %s122
      %s125 = sshll.u32 [#allocation8], 4
      %s126 = int_to_ptr.vmem [resolvable:$true] %s125
      %128 = dma.vmem_to_hbm [thread:$0]  %s126, 16, %s2, [#allocation5]
    $region29: #{tpu_custom_call.1} parent=1 // pred_fallthru
      _
    // Predicated region
    $region30: #{tpu_custom_call.1} parent=1 // pred_check
      _
    $region31: #{tpu_custom_call.1} parent=1 // pred_check_branch
      %130 = sbr.rel (0) target = $region33
    $region32: #{tpu_custom_call.1} parent=1 // pred_region
      %131 = dma.done [#allocation5], 16
    $region33: #{tpu_custom_call.1} parent=1 // pred_fallthru
      _
    %132 = vsyncpa [#allocation4], 1
    %133 = vsyncpa [#allocation7], 1
    %134 = vsyncpa [#allocation5], 1

</llo_original>
